<compile_context>
chip_gen: v6e
topology: v6e:2x2x1
jax: 0.10.0
libtpu: 0.0.40
codegen_flags: <defaults>
</compile_context>

<pallas_src>
import functools

import jax
import jax.numpy as jnp
from jax.experimental import pallas as pl
from jax.experimental.pallas import tpu as pltpu

LANE = 128
NEG_BIG = -1e30  # finite "minus infinity": exp() underflows to 0, no 0*inf NaNs


def _round_up(a, m):
    return ((a + m - 1) // m) * m


def _mlp_loss_kernel(x_ref, w1_ref, b1_ref, w2_ref, b2_ref, lab_ref,
                     probs_ref, loss_ref, *, b_total, tile_b):
    # fc1: bf16 MXU operands (x cast in-kernel), f32 accumulation; bias + ReLU in f32.
    # dropout(p=0.0) is the identity, so nothing to apply.
    h = jnp.dot(x_ref[...].astype(jnp.bfloat16), w1_ref[...],
                preferred_element_type=jnp.float32)
    h = jnp.maximum(h + b1_ref[...], 0.0)

    # fc2 -> logits. Padded class columns have w2 == 0 and bias == NEG_BIG,
    # so they are masked out of the softmax.
    logits = jnp.dot(h.astype(jnp.bfloat16), w2_ref[...],
                     preferred_element_type=jnp.float32)
    logits = logits + b2_ref[...]

    # numerically-stable softmax over the lane-dense class dim (exact division)
    m = jnp.max(logits, axis=-1, keepdims=True)
    e = jnp.exp(logits - m)
    s = jnp.sum(e, axis=-1, keepdims=True)
    probs_ref[...] = e / s

    # per-example CE without a materialized one-hot:
    #   ce = logsumexp(logits) - logits[label] = (m + log s) - correct_logit
    cls = jax.lax.broadcasted_iota(jnp.int32, logits.shape, 1)
    correct = jnp.sum(jnp.where(cls == lab_ref[...], logits, 0.0),
                      axis=-1, keepdims=True)
    ce = (m + jnp.log(s)) - correct                                  # (TB, 1)

    # mask rows beyond the true batch (ragged last tile), reduce to a per-tile scalar
    row = (pl.program_id(0) * tile_b
           + jax.lax.broadcasted_iota(jnp.int32, ce.shape, 0))
    tile_sum = jnp.sum(jnp.where(row < b_total, ce, 0.0))
    # one dense (1, 8, 128) vreg store per grid step (lane-dense, unmasked)
    loss_ref[...] = jnp.full(loss_ref.shape, tile_sum, jnp.float32)


def _mlp_infer_kernel(x_ref, w1_ref, b1_ref, w2_ref, b2_ref, probs_ref):
    h = jnp.dot(x_ref[...].astype(jnp.bfloat16), w1_ref[...],
                preferred_element_type=jnp.float32)
    h = jnp.maximum(h + b1_ref[...], 0.0)
    logits = jnp.dot(h.astype(jnp.bfloat16), w2_ref[...],
                     preferred_element_type=jnp.float32)
    logits = logits + b2_ref[...]
    m = jnp.max(logits, axis=-1, keepdims=True)
    e = jnp.exp(logits - m)
    probs_ref[...] = e / jnp.sum(e, axis=-1, keepdims=True)


def net_forward(x, w1, b1, w2, b2, labels=None, *, tile_b=512):
    """Pallas TPU forward of `Net`: returns (softmax probs (B,C), mean CE loss or None).

    x: (B, D) f32; w1: (D, H); b1: (1, H); w2: (H, C); b2: (1, C); labels: (B,) int or None.
    """
    B, D = x.shape
    H = w1.shape[1]
    C = w2.shape[1]
    C_pad = _round_up(C, LANE)

    # Batch tile: large (amortize ~0.35us/step pipeline overhead), multiple of 16
    # (bf16 sublane packing), capped so B spans >= 2 tiles when possible so both
    # v7x TensorCores get work under the "parallel" batch axis.
    TB = min(tile_b, max(16, _round_up((B + 1) // 2, 16)))
    num_tiles = pl.cdiv(B, TB)

    # One-time parameter prep: bf16 MXU operands; padded classes masked via bias.
    # (Constant index_maps keep these VMEM-resident across grid steps; at D=32/H=128
    #  they are ~80 KB total, so single-buffering them is not worth the risk here.)
    w1_bf = w1.astype(jnp.bfloat16)
    b1_f = b1.reshape(1, H).astype(jnp.float32)
    w2_bf = jnp.zeros((H, C_pad), jnp.bfloat16).at[:, :C].set(w2.astype(jnp.bfloat16))
    b2_f = jnp.full((1, C_pad), NEG_BIG, jnp.float32).at[:, :C].set(
        b2.reshape(1, C).astype(jnp.float32))

    x_spec = pl.BlockSpec((TB, D), lambda i: (i, 0))
    w1_spec = pl.BlockSpec((D, H), lambda i: (0, 0))
    b1_spec = pl.BlockSpec((1, H), lambda i: (0, 0))
    w2_spec = pl.BlockSpec((H, C_pad), lambda i: (0, 0))
    b2_spec = pl.BlockSpec((1, C_pad), lambda i: (0, 0))
    probs_spec = pl.BlockSpec((TB, C_pad), lambda i: (i, 0))

    flops = 2 * B * (D * H + H * C_pad)
    transcendentals = B * (C_pad + 1)
    base_bytes = (x.size * 4 + w1_bf.size * 2 + b1_f.size * 4
                  + w2_bf.size * 2 + b2_f.size * 4 + B * C_pad * 4)

    compiler_params = pltpu.CompilerParams(dimension_semantics=("parallel",))

    if labels is None:
        # Inference path: no labels input, no loss math.
        probs_pad = pl.pallas_call(
            _mlp_infer_kernel,
            grid=(num_tiles,),
            in_specs=[x_spec, w1_spec, b1_spec, w2_spec, b2_spec],
            out_specs=probs_spec,
            out_shape=jax.ShapeDtypeStruct((B, C_pad), jnp.float32),
            compiler_params=compiler_params,
            cost_estimate=pl.CostEstimate(
                flops=flops, transcendentals=transcendentals,
                bytes_accessed=base_bytes),
        )(x, w1_bf, b1_f, w2_bf, b2_f)
        return probs_pad[:, :C], None

    lab2d = labels.reshape(B, 1).astype(jnp.int32)
    lab_spec = pl.BlockSpec((TB, 1), lambda i: (i, 0))
    loss_spec = pl.BlockSpec((1, 8, LANE), lambda i: (i, 0, 0))

    kernel = functools.partial(_mlp_loss_kernel, b_total=B, tile_b=TB)
    probs_pad, tile_loss = pl.pallas_call(
        kernel,
        grid=(num_tiles,),
        in_specs=[x_spec, w1_spec, b1_spec, w2_spec, b2_spec, lab_spec],
        out_specs=(probs_spec, loss_spec),
        out_shape=(jax.ShapeDtypeStruct((B, C_pad), jnp.float32),
                   jax.ShapeDtypeStruct((num_tiles, 8, LANE), jnp.float32)),
        compiler_params=compiler_params,
        cost_estimate=pl.CostEstimate(
            flops=flops, transcendentals=transcendentals,
            bytes_accessed=base_bytes + B * 4 + num_tiles * 8 * LANE * 4),
    )(x, w1_bf, b1_f, w2_bf, b2_f, lab2d)

    probs = probs_pad[:, :C]                     # caller-facing (B, C)
    loss = jnp.sum(tile_loss[:, 0, 0]) / B       # mean CE over the global batch
    return probs, loss


if __name__ == "__main__":
    # Small shapes consistent with the module: Linear(D->H=128), Linear(H->C).
    # B=24 exercises a multi-tile grid with a ragged last batch block.
    B, D, H, C = 24, 32, 128, 10

    key = jax.random.PRNGKey(0)
    kx, kl, kw1, kb1, kw2, kb2 = jax.random.split(key, 6)

    bound1 = 1.0 / (D ** 0.5)
    bound2 = 1.0 / (H ** 0.5)
    w1 = jax.random.uniform(kw1, (D, H), jnp.float32, -bound1, bound1)
    b1 = jax.random.uniform(kb1, (1, H), jnp.float32, -bound1, bound1)
    w2 = jax.random.uniform(kw2, (H, C), jnp.float32, -bound2, bound2)
    b2 = jax.random.uniform(kb2, (1, C), jnp.float32, -bound2, bound2)

    x = jax.random.normal(kx, (B, D), jnp.float32)
    labels = jax.random.randint(kl, (B,), 0, C)

    # Training path (probs + mean cross-entropy loss)
    probs, loss = net_forward(x, w1, b1, w2, b2, labels)
    jax.block_until_ready(probs)
    jax.block_until_ready(loss)

    # Inference path (labels=None -> no loss math)
    probs_inf, loss_inf = net_forward(x, w1, b1, w2, b2, None)
    jax.block_until_ready(probs_inf)

    assert probs.shape == (B, C)
    assert loss_inf is None
    assert bool(jnp.all(jnp.isfinite(probs))) and bool(jnp.isfinite(loss))
    assert jnp.allclose(jnp.sum(probs, axis=-1), 1.0, atol=1e-3)
    assert jnp.allclose(probs, probs_inf, atol=1e-5)

    # Pure-JAX reference (bf16 matmul operands to match the kernel's precision)
    h_ref = jnp.maximum(
        jnp.dot(x.astype(jnp.bfloat16), w1.astype(jnp.bfloat16),
                preferred_element_type=jnp.float32) + b1, 0.0)
    logits_ref = jnp.dot(h_ref.astype(jnp.bfloat16), w2.astype(jnp.bfloat16),
                         preferred_element_type=jnp.float32) + b2
    probs_ref = jax.nn.softmax(logits_ref, axis=-1)
    lp_ref = jax.nn.log_softmax(logits_ref, axis=-1)
    loss_ref = -jnp.mean(lp_ref[jnp.arange(B), labels])
    assert jnp.allclose(probs, probs_ref, atol=2e-3)
    assert jnp.allclose(loss, loss_ref, atol=2e-3)

    # TODO(synk): loss_func is a constructor argument in the PyTorch module; CrossEntropyLoss
    # (mean reduction) is implemented here. Dropout p=0.0 is the identity; p>0 would use
    # pltpu.prng_seed / pltpu.prng_random_bits.
    print("KERNEL_OK")
</pallas_src>

<mosaic_0001>
module attributes {stable_mosaic.version = 11 : i64} {
  func.func @_mlp_loss_kernel(%arg0: i32, %arg1: memref<16x32xf32, #tpu.memory_space<vmem>>, %arg2: memref<32x128xbf16, #tpu.memory_space<vmem>>, %arg3: memref<1x128xf32, #tpu.memory_space<vmem>>, %arg4: memref<128x128xbf16, #tpu.memory_space<vmem>>, %arg5: memref<1x128xf32, #tpu.memory_space<vmem>>, %arg6: memref<16x1xi32, #tpu.memory_space<vmem>>, %arg7: memref<16x128xf32, #tpu.memory_space<vmem>>, %arg8: memref<1x8x128xf32, #tpu.memory_space<vmem>>) attributes {dimension_semantics = [#tpu.dimension_semantics<parallel>], iteration_bounds = array<i64: 2>, scalar_prefetch = 0 : i64, scratch_operands = 0 : i64, tpu.core_type = #tpu.core_type<tc>, window_params = [{transform_indices = @transform_0, window_bounds = array<i64: 16, 32>}, {pipeline_mode = #tpu.pipeline_mode<synchronous>, transform_indices = @transform_1, window_bounds = array<i64: 32, 128>}, {pipeline_mode = #tpu.pipeline_mode<synchronous>, transform_indices = @transform_2, window_bounds = array<i64: 1, 128>}, {pipeline_mode = #tpu.pipeline_mode<synchronous>, transform_indices = @transform_3, window_bounds = array<i64: 128, 128>}, {pipeline_mode = #tpu.pipeline_mode<synchronous>, transform_indices = @transform_4, window_bounds = array<i64: 1, 128>}, {transform_indices = @transform_5, window_bounds = array<i64: 16, 1>}, {transform_indices = @transform_6, window_bounds = array<i64: 16, 128>}, {transform_indices = @transform_7, window_bounds = array<i64: 1, 8, 128>}]} {
    %c0 = arith.constant 0 : index
    %c0_0 = arith.constant 0 : index
    %0 = vector.load %arg1[%c0, %c0_0] : memref<16x32xf32, #tpu.memory_space<vmem>>, vector<16x32xf32>
    %1 = arith.truncf %0 : vector<16x32xf32> to vector<16x32xbf16>
    %c0_1 = arith.constant 0 : index
    %c0_2 = arith.constant 0 : index
    %2 = vector.load %arg2[%c0_1, %c0_2] : memref<32x128xbf16, #tpu.memory_space<vmem>>, vector<32x128xbf16>
    %cst = arith.constant dense<0.000000e+00> : vector<16x128xf32>
    %3 = tpu.matmul %1, %2, %cst {dimension_numbers = #tpu.dot_dimension_numbers<[1], [0], [0], [1], [0, 0, 1, 1], [], []>} : vector<16x32xbf16>, vector<32x128xbf16>, vector<16x128xf32> -> vector<16x128xf32>
    %c0_3 = arith.constant 0 : index
    %c0_4 = arith.constant 0 : index
    %4 = vector.load %arg3[%c0_3, %c0_4] : memref<1x128xf32, #tpu.memory_space<vmem>>, vector<1x128xf32>
    %5 = vector.broadcast %4 : vector<1x128xf32> to vector<16x128xf32>
    %6 = arith.addf %3, %5 : vector<16x128xf32>
    %cst_5 = arith.constant 0.000000e+00 : f32
    %7 = vector.broadcast %cst_5 : f32 to vector<16x128xf32>
    %8 = arith.maximumf %6, %7 : vector<16x128xf32>
    %9 = arith.truncf %8 : vector<16x128xf32> to vector<16x128xbf16>
    %c0_6 = arith.constant 0 : index
    %c0_7 = arith.constant 0 : index
    %10 = vector.load %arg4[%c0_6, %c0_7] : memref<128x128xbf16, #tpu.memory_space<vmem>>, vector<128x128xbf16>
    %cst_8 = arith.constant dense<0.000000e+00> : vector<16x128xf32>
    %11 = tpu.matmul %9, %10, %cst_8 {dimension_numbers = #tpu.dot_dimension_numbers<[1], [0], [0], [1], [0, 0, 1, 1], [], []>} : vector<16x128xbf16>, vector<128x128xbf16>, vector<16x128xf32> -> vector<16x128xf32>
    %c0_9 = arith.constant 0 : index
    %c0_10 = arith.constant 0 : index
    %12 = vector.load %arg5[%c0_9, %c0_10] : memref<1x128xf32, #tpu.memory_space<vmem>>, vector<1x128xf32>
    %13 = vector.broadcast %12 : vector<1x128xf32> to vector<16x128xf32>
    %14 = arith.addf %11, %13 : vector<16x128xf32>
    %cst_11 = arith.constant dense<0xFF800000> : vector<16xf32>
    %15 = vector.multi_reduction <maximumf>, %14, %cst_11 [1] : vector<16x128xf32> to vector<16xf32>
    %16 = vector.shape_cast %15 : vector<16xf32> to vector<16x1xf32>
    %17 = vector.broadcast %16 : vector<16x1xf32> to vector<16x128xf32>
    %18 = arith.subf %14, %17 : vector<16x128xf32>
    %19 = math.exp %18 : vector<16x128xf32>
    %cst_12 = arith.constant dense<0.000000e+00> : vector<16xf32>
    %20 = vector.multi_reduction <add>, %19, %cst_12 [1] : vector<16x128xf32> to vector<16xf32>
    %21 = vector.shape_cast %20 : vector<16xf32> to vector<16x1xf32>
    %22 = vector.broadcast %21 : vector<16x1xf32> to vector<16x128xf32>
    %23 = arith.divf %19, %22 : vector<16x128xf32>
    %c0_13 = arith.constant 0 : index
    %c0_14 = arith.constant 0 : index
    %24 = vector.load %arg7[%c0_13, %c0_14] : memref<16x128xf32, #tpu.memory_space<vmem>>, vector<16x128xf32>
    tpu.vector_store %arg7[%c0_13, %c0_14], %23 {strides = array<i32>} : memref<16x128xf32, #tpu.memory_space<vmem>>, vector<16x128xf32>,
    %25 = tpu.iota {dimensions = array<i32: 1>} : vector<16x128xi32>
    %c0_15 = arith.constant 0 : index
    %c0_16 = arith.constant 0 : index
    %26 = vector.load %arg6[%c0_15, %c0_16] : memref<16x1xi32, #tpu.memory_space<vmem>>, vector<16x1xi32>
    %27 = vector.broadcast %26 : vector<16x1xi32> to vector<16x128xi32>
    %28 = arith.cmpi eq, %25, %27 : vector<16x128xi32>
    %cst_17 = arith.constant 0.000000e+00 : f32
    %29 = vector.broadcast %cst_17 : f32 to vector<16x128xf32>
    %30 = arith.select %28, %14, %29 : vector<16x128xi1>, vector<16x128xf32>
    %cst_18 = arith.constant dense<0.000000e+00> : vector<16xf32>
    %31 = vector.multi_reduction <add>, %30, %cst_18 [1] : vector<16x128xf32> to vector<16xf32>
    %32 = vector.shape_cast %31 : vector<16xf32> to vector<16x1xf32>
    %33 = math.log %21 : vector<16x1xf32>
    %34 = arith.addf %16, %33 : vector<16x1xf32>
    %35 = arith.subf %34, %32 : vector<16x1xf32>
    %c16_i32 = arith.constant 16 : i32
    %36 = arith.muli %arg0, %c16_i32 : i32
    %37 = tpu.iota {dimensions = array<i32: 0>} : vector<16x1xi32>
    %38 = vector.broadcast %36 : i32 to vector<16x1xi32>
    %39 = arith.addi %38, %37 : vector<16x1xi32>
    %c24_i32 = arith.constant 24 : i32
    %40 = vector.broadcast %c24_i32 : i32 to vector<16x1xi32>
    %41 = arith.cmpi slt, %39, %40 : vector<16x1xi32>
    %cst_19 = arith.constant 0.000000e+00 : f32
    %42 = vector.broadcast %cst_19 : f32 to vector<16x1xf32>
    %43 = arith.select %41, %35, %42 : vector<16x1xi1>, vector<16x1xf32>
    %44 = vector.shape_cast %43 : vector<16x1xf32> to vector<1x16x1xf32>
    %cst_20 = arith.constant dense<0.000000e+00> : vector<1xf32>
    %45 = vector.multi_reduction <add>, %44, %cst_20 [1, 2] : vector<1x16x1xf32> to vector<1xf32>
    %46 = vector.shape_cast %45 : vector<1xf32> to vector<1x1x1xf32>
    %47 = vector.extract %46[0, 0, 0] : f32 from vector<1x1x1xf32>
    %48 = vector.broadcast %47 : f32 to vector<1x8x128xf32>
    %c0_21 = arith.constant 0 : index
    %c0_22 = arith.constant 0 : index
    %c0_23 = arith.constant 0 : index
    %49 = vector.load %arg8[%c0_21, %c0_22, %c0_23] : memref<1x8x128xf32, #tpu.memory_space<vmem>>, vector<1x8x128xf32>
    tpu.vector_store %arg8[%c0_21, %c0_22, %c0_23], %48 {strides = array<i32>} : memref<1x8x128xf32, #tpu.memory_space<vmem>>, vector<1x8x128xf32>,
    return
  }
  func.func @transform_0(%arg0: i32) -> (i32, i32) {
    %c0_i32 = arith.constant 0 : i32
    %c0_i32_0 = arith.constant 0 : i32
    return %arg0, %c0_i32 : i32, i32
  }
  func.func @transform_1(%arg0: i32) -> (i32, i32) {
    %c0_i32 = arith.constant 0 : i32
    %c0_i32_0 = arith.constant 0 : i32
    %c0_i32_1 = arith.constant 0 : i32
    return %c0_i32, %c0_i32_0 : i32, i32
  }
  func.func @transform_2(%arg0: i32) -> (i32, i32) {
    %c0_i32 = arith.constant 0 : i32
    %c0_i32_0 = arith.constant 0 : i32
    %c0_i32_1 = arith.constant 0 : i32
    return %c0_i32, %c0_i32_0 : i32, i32
  }
  func.func @transform_3(%arg0: i32) -> (i32, i32) {
    %c0_i32 = arith.constant 0 : i32
    %c0_i32_0 = arith.constant 0 : i32
    %c0_i32_1 = arith.constant 0 : i32
    return %c0_i32, %c0_i32_0 : i32, i32
  }
  func.func @transform_4(%arg0: i32) -> (i32, i32) {
    %c0_i32 = arith.constant 0 : i32
    %c0_i32_0 = arith.constant 0 : i32
    %c0_i32_1 = arith.constant 0 : i32
    return %c0_i32, %c0_i32_0 : i32, i32
  }
  func.func @transform_5(%arg0: i32) -> (i32, i32) {
    %c0_i32 = arith.constant 0 : i32
    %c0_i32_0 = arith.constant 0 : i32
    return %arg0, %c0_i32 : i32, i32
  }
  func.func @transform_6(%arg0: i32) -> (i32, i32) {
    %c0_i32 = arith.constant 0 : i32
    %c0_i32_0 = arith.constant 0 : i32
    return %arg0, %c0_i32 : i32, i32
  }
  func.func @transform_7(%arg0: i32) -> (i32, i32, i32) {
    %c0_i32 = arith.constant 0 : i32
    %c0_i32_0 = arith.constant 0 : i32
    %c0_i32_1 = arith.constant 0 : i32
    return %arg0, %c0_i32, %c0_i32_0 : i32, i32, i32
  }
}

</mosaic_0001>

<llo_original>
// kernel: tpu_custom_call.1
$region0: #{tpu_custom_call.1}
  #allocation0 [shape = 'u32[]', space=smem, size = 0x4, offset = 0x4, fixed_abs, tag = 'smem constant byte address 0x4 - core index']
  #allocation1 [shape = 'u32[144,128]{1,0:T(1,128)}', space=vmem, size = 0x12000, scoped, tag = 'internal scratch']
  %s0 = inlined_call_operand.vmem [shape: f32[24,32], index: 0, kind: input, shape index: {}]
  %s1 = inlined_call_operand.hbm [shape: bf16[32,128], index: 1, kind: input, shape index: {}]
  %s2 = inlined_call_operand.vmem [shape: f32[1,128], index: 2, kind: input, shape index: {}]
  %s3 = inlined_call_operand.hbm [shape: bf16[128,128], index: 3, kind: input, shape index: {}]
  %s4 = inlined_call_operand.vmem [shape: f32[1,128], index: 4, kind: input, shape index: {}]
  %s5 = inlined_call_operand.vmem [shape: s32[24,1], index: 5, kind: input, shape index: {}]
  %s6 = inlined_call_operand.hbm [shape: f32[24,128], index: 6, kind: output, shape index: {0}]
  %s7 = inlined_call_operand.hbm [shape: f32[2,8,128], index: 7, kind: output, shape index: {1}]
  %8 = xla_tuple %s6, %s7
  %s9 = sld [smem:[#allocation0]]
  $region73: #{tpu_custom_call.1} parent=0
    _
  %s11 = ssub.s32 1, %s9
  %s12 = scalar_select 0, %s11, %s9
  $region1: #{tpu_custom_call.1} parent=0
    #allocation2 [shape = 'u8[8192]{0}', space=vmem, size = 0x2000, scoped, tag = 'input window, operand 1, single buffered']
    #allocation3 [shape = 's32[2]{0}', space=sflag, size = 0x8, scoped, tag = 'scoped memory for tpu_custom_call.1']
    #allocation4 [shape = 's32[2]{0}', space=sflag, size = 0x8, scoped, tag = 'scoped memory for tpu_custom_call.1']
    #allocation5 [shape = 'u8[32768]{0}', space=vmem, size = 0x8000, scoped, tag = 'input window, operand 3, single buffered']
    #allocation6 [shape = 's32[1]{0}', space=sflag, size = 0x4, scoped, tag = 'scoped memory for tpu_custom_call.1']
    #allocation7 [shape = 'u8[16384]{0}', space=vmem, size = 0x4000, scoped, tag = 'output window, operand 0']
    #allocation8 [shape = 'u8[8192]{0}', space=vmem, size = 0x2000, scoped, tag = 'output window, operand 1']
    #allocation9 [shape = 's32[2]{0}', space=sflag, size = 0x8, scoped, tag = 'scoped memory for tpu_custom_call.1']
    %13 = vsyncpa [#allocation3], 0
    %14 = vsyncpa [#allocation6], 0
    %15 = vsyncpa [#allocation4], 0
    %s16 = scalar_lea.sflag [#allocation4], 1
    %17 = vsyncpa %s16, 0
    %18 = vsyncpa [#allocation9], 0
    %s19 = scalar_lea.sflag [#allocation9], 1
    %20 = vsyncpa %s19, 0
    loop: start=0, step=1, limit=4
    $region2: #{tpu_custom_call.1} parent=1 // loop_pre_header
      _
    $region3: #{tpu_custom_call.1} parent=1 // loop_header
      %s22 = sphi 0, %s26
      %p23 = scmp.ge.s32.totalorder %s22, 4
      %s32 = sphi 0, %s34
      %s35 = sphi 0, %s32
      %s36 = sphi 0, %s35
      %s52 = sphi 0, %s36
      %s56 = sphi 0, %s56
      %s58 = sphi 0, %s56
      %s59 = sphi 0, %s58
      %s73 = sphi 0, %s59
      %s77 = sphi 0, %s77
      %s79 = sphi 0, %s77
      %s80 = sphi 0, %s79
      %s94 = sphi 0, %s80
      %s98 = sphi 0, %s98
      %s100 = sphi 0, %s98
      %s101 = sphi 0, %s100
      %s115 = sphi 0, %s101
      %s119 = sphi 0, %s119
      %s121 = sphi 0, %s119
      %s122 = sphi 0, %s121
      %s136 = sphi 0, %s122
      %s142 = sphi 0, %s144
      %s145 = sphi 0, %s142
      %s146 = sphi 0, %s145
      %s162 = sphi 0, %s146
      %s168 = sphi 0, %s170
      %s171 = sphi 0, %s168
      %s172 = sphi 0, %s171
      %s188 = sphi 0, %s172
      %s194 = sphi 0, %s196
      %s197 = sphi 0, %s194
      %s198 = sphi 0, %s197
      %s214 = sphi 0, %s198
    $region4: #{tpu_custom_call.1} parent=1 // loop_header_branch
      %25 = sbr.rel (%p23) target = $region8
    $region5: #{tpu_custom_call.1} parent=1 // loop_body
      %s27 = ssub.s32 %s22, 1
      %s28 = ssub.s32 %s22, 2
      %s29 = sadd.s32 %s22, 1
      %s30 = ssub.s32 %s22, %s29
      %p31 = scmp.eq.s32.totalorder %s30, 0
      %s33 = sadd.s32 %s32, 1
      %s34 = scalar_select %p31, %s32, %s33
      %p37 = pneg %p31
      %p38 = scmp.eq.s32.totalorder %s22, 1
      %p39 = por %p37, %p38
      %p40 = scmp.ne.s32.totalorder %s32, %s35
      %p41 = scmp.eq.s32.totalorder %s22, 0
      %p42 = por %p40, %p41
      %p43 = scmp.ne.s32.totalorder %s32, %s35
      %p44 = scmp.eq.s32.totalorder %s27, 1
      %p45 = por %p43, %p44
      %p46 = scmp.ne.s32.totalorder %s35, %s36
      %p47 = scmp.eq.s32.totalorder %s27, 0
      %p48 = por %p46, %p47
      %p49 = scmp.ne.s32.totalorder %s35, %s36
      %p50 = scmp.eq.s32.totalorder %s28, 1
      %p51 = por %p49, %p50
      %p53 = scmp.ne.s32.totalorder %s36, %s52
      %p54 = scmp.eq.s32.totalorder %s28, 0
      %p55 = por %p53, %p54
      %s57 = sadd.s32 %s56, 1
      %p60 = scmp.eq.s32.totalorder %s22, 1
      %p61 = scmp.ne.s32.totalorder %s56, %s58
      %p62 = scmp.eq.s32.totalorder %s22, 0
      %p63 = por %p61, %p62
      %p64 = scmp.ne.s32.totalorder %s56, %s58
      %p65 = scmp.eq.s32.totalorder %s27, 1
      %p66 = por %p64, %p65
      %p67 = scmp.ne.s32.totalorder %s58, %s59
      %p68 = scmp.eq.s32.totalorder %s27, 0
      %p69 = por %p67, %p68
      %p70 = scmp.ne.s32.totalorder %s58, %s59
      %p71 = scmp.eq.s32.totalorder %s28, 1
      %p72 = por %p70, %p71
      %p74 = scmp.ne.s32.totalorder %s59, %s73
      %p75 = scmp.eq.s32.totalorder %s28, 0
      %p76 = por %p74, %p75
      %s78 = sadd.s32 %s77, 1
      %p81 = scmp.eq.s32.totalorder %s22, 1
      %p82 = scmp.ne.s32.totalorder %s77, %s79
      %p83 = scmp.eq.s32.totalorder %s22, 0
      %p84 = por %p82, %p83
      %p85 = scmp.ne.s32.totalorder %s77, %s79
      %p86 = scmp.eq.s32.totalorder %s27, 1
      %p87 = por %p85, %p86
      %p88 = scmp.ne.s32.totalorder %s79, %s80
      %p89 = scmp.eq.s32.totalorder %s27, 0
      %p90 = por %p88, %p89
      %p91 = scmp.ne.s32.totalorder %s79, %s80
      %p92 = scmp.eq.s32.totalorder %s28, 1
      %p93 = por %p91, %p92
      %p95 = scmp.ne.s32.totalorder %s80, %s94
      %p96 = scmp.eq.s32.totalorder %s28, 0
      %p97 = por %p95, %p96
      %s99 = sadd.s32 %s98, 1
      %p102 = scmp.eq.s32.totalorder %s22, 1
      %p103 = scmp.ne.s32.totalorder %s98, %s100
      %p104 = scmp.eq.s32.totalorder %s22, 0
      %p105 = por %p103, %p104
      %p106 = scmp.ne.s32.totalorder %s98, %s100
      %p107 = scmp.eq.s32.totalorder %s27, 1
      %p108 = por %p106, %p107
      %p109 = scmp.ne.s32.totalorder %s100, %s101
      %p110 = scmp.eq.s32.totalorder %s27, 0
      %p111 = por %p109, %p110
      %p112 = scmp.ne.s32.totalorder %s100, %s101
      %p113 = scmp.eq.s32.totalorder %s28, 1
      %p114 = por %p112, %p113
      %p116 = scmp.ne.s32.totalorder %s101, %s115
      %p117 = scmp.eq.s32.totalorder %s28, 0
      %p118 = por %p116, %p117
      %s120 = sadd.s32 %s119, 1
      %p123 = scmp.eq.s32.totalorder %s22, 1
      %p124 = scmp.ne.s32.totalorder %s119, %s121
      %p125 = scmp.eq.s32.totalorder %s22, 0
      %p126 = por %p124, %p125
      %p127 = scmp.ne.s32.totalorder %s119, %s121
      %p128 = scmp.eq.s32.totalorder %s27, 1
      %p129 = por %p127, %p128
      %p130 = scmp.ne.s32.totalorder %s121, %s122
      %p131 = scmp.eq.s32.totalorder %s27, 0
      %p132 = por %p130, %p131
      %p133 = scmp.ne.s32.totalorder %s121, %s122
      %p134 = scmp.eq.s32.totalorder %s28, 1
      %p135 = por %p133, %p134
      %p137 = scmp.ne.s32.totalorder %s122, %s136
      %p138 = scmp.eq.s32.totalorder %s28, 0
      %p139 = por %p137, %p138
      %s140 = ssub.s32 %s22, %s29
      %p141 = scmp.eq.s32.totalorder %s140, 0
      %s143 = sadd.s32 %s142, 1
      %s144 = scalar_select %p141, %s142, %s143
      %p147 = pneg %p141
      %p148 = scmp.eq.s32.totalorder %s22, 1
      %p149 = por %p147, %p148
      %p150 = scmp.ne.s32.totalorder %s142, %s145
      %p151 = scmp.eq.s32.totalorder %s22, 0
      %p152 = por %p150, %p151
      %p153 = scmp.ne.s32.totalorder %s142, %s145
      %p154 = scmp.eq.s32.totalorder %s27, 1
      %p155 = por %p153, %p154
      %p156 = scmp.ne.s32.totalorder %s145, %s146
      %p157 = scmp.eq.s32.totalorder %s27, 0
      %p158 = por %p156, %p157
      %p159 = scmp.ne.s32.totalorder %s145, %s146
      %p160 = scmp.eq.s32.totalorder %s28, 1
      %p161 = por %p159, %p160
      %p163 = scmp.ne.s32.totalorder %s146, %s162
      %p164 = scmp.eq.s32.totalorder %s28, 0
      %p165 = por %p163, %p164
      %s166 = ssub.s32 %s22, %s29
      %p167 = scmp.eq.s32.totalorder %s166, 0
      %s169 = sadd.s32 %s168, 1
      %s170 = scalar_select %p167, %s168, %s169
      %p173 = pneg %p167
      %p174 = scmp.eq.s32.totalorder %s22, 1
      %p175 = por %p173, %p174
      %p176 = scmp.ne.s32.totalorder %s168, %s171
      %p177 = scmp.eq.s32.totalorder %s22, 0
      %p178 = por %p176, %p177
      %p179 = scmp.ne.s32.totalorder %s168, %s171
      %p180 = scmp.eq.s32.totalorder %s27, 1
      %p181 = por %p179, %p180
      %p182 = scmp.ne.s32.totalorder %s171, %s172
      %p183 = scmp.eq.s32.totalorder %s27, 0
      %p184 = por %p182, %p183
      %p185 = scmp.ne.s32.totalorder %s171, %s172
      %p186 = scmp.eq.s32.totalorder %s28, 1
      %p187 = por %p185, %p186
      %p189 = scmp.ne.s32.totalorder %s172, %s188
      %p190 = scmp.eq.s32.totalorder %s28, 0
      %p191 = por %p189, %p190
      %s192 = ssub.s32 %s22, %s29
      %p193 = scmp.eq.s32.totalorder %s192, 0
      %s195 = sadd.s32 %s194, 1
      %s196 = scalar_select %p193, %s194, %s195
      %p199 = pneg %p193
      %p200 = scmp.eq.s32.totalorder %s22, 1
      %p201 = por %p199, %p200
      %p202 = scmp.ne.s32.totalorder %s194, %s197
      %p203 = scmp.eq.s32.totalorder %s22, 0
      %p204 = por %p202, %p203
      %p205 = scmp.ne.s32.totalorder %s194, %s197
      %p206 = scmp.eq.s32.totalorder %s27, 1
      %p207 = por %p205, %p206
      %p208 = scmp.ne.s32.totalorder %s197, %s198
      %p209 = scmp.eq.s32.totalorder %s27, 0
      %p210 = por %p208, %p209
      %p211 = scmp.ne.s32.totalorder %s197, %s198
      %p212 = scmp.eq.s32.totalorder %s28, 1
      %p213 = por %p211, %p212
      %p215 = scmp.ne.s32.totalorder %s198, %s214
      %p216 = scmp.eq.s32.totalorder %s28, 0
      %p217 = por %p215, %p216
      %p218 = scmp.le.s32.totalorder 1, %s22
      %p219 = scmp.lt.s32.totalorder %s22, 3
      %p220 = pnand %p218, %p219
      %p221 = pneg %p220
      // Predicated region
      $region9: #{tpu_custom_call.1} parent=5 // pred_check
        _
      $region10: #{tpu_custom_call.1} parent=5 // pred_check_branch
        %223 = sbr.rel (%p220) target = $region12
      $region11: #{tpu_custom_call.1} parent=5 // pred_region
        %s224 = ssub.s32 %s22, 1
        // Predicated region
        $region13: #{tpu_custom_call.1} parent=11 // pred_check
          %p225 = pneg %p69
        $region14: #{tpu_custom_call.1} parent=11 // pred_check_branch
          %227 = sbr.rel (%p225) target = $region16
        $region15: #{tpu_custom_call.1} parent=11 // pred_region
          %s229 = ssub.s32 256, 256
          %230 = vsyncadd [#allocation3], %s229
          %s231 = sshll.u32 [#allocation2], 4
          %s232 = int_to_ptr.vmem [resolvable:$true] %s231
          %237 = dma.hbm_to_vmem [thread:$0]  %s1, 256, %s232, [#allocation3], 64, 64, 4
        $region16: #{tpu_custom_call.1} parent=11 // pred_fallthru
          _
        // Predicated region
        $region17: #{tpu_custom_call.1} parent=11 // pred_check
          %p238 = pneg %p90
        $region18: #{tpu_custom_call.1} parent=11 // pred_check_branch
          %240 = sbr.rel (%p238) target = $region20
        $region19: #{tpu_custom_call.1} parent=11 // pred_region
          _
        $region20: #{tpu_custom_call.1} parent=11 // pred_fallthru
          _
        // Predicated region
        $region21: #{tpu_custom_call.1} parent=11 // pred_check
          %p241 = pneg %p111
        $region22: #{tpu_custom_call.1} parent=11 // pred_check_branch
          %243 = sbr.rel (%p241) target = $region24
        $region23: #{tpu_custom_call.1} parent=11 // pred_region
          %s245 = ssub.s32 1024, 1024
          %246 = vsyncadd [#allocation6], %s245
          %s247 = sshll.u32 [#allocation5], 4
          %s248 = int_to_ptr.vmem [resolvable:$true] %s247
          %253 = dma.hbm_to_vmem [thread:$0]  %s3, 1024, %s248, [#allocation6], 64, 64, 4
        $region24: #{tpu_custom_call.1} parent=11 // pred_fallthru
          _
        // Predicated region
        $region25: #{tpu_custom_call.1} parent=11 // pred_check
          %p254 = pneg %p132
        $region26: #{tpu_custom_call.1} parent=11 // pred_check_branch
          %256 = sbr.rel (%p254) target = $region28
        $region27: #{tpu_custom_call.1} parent=11 // pred_region
          _
        $region28: #{tpu_custom_call.1} parent=11 // pred_fallthru
          _
      $region12: #{tpu_custom_call.1} parent=5 // pred_fallthru
        _
      %p257 = scmp.lt.s32.totalorder %s22, 2
      // Predicated region
      $region29: #{tpu_custom_call.1} parent=5 // pred_check
        %p258 = pneg %p257
      $region30: #{tpu_custom_call.1} parent=5 // pred_check_branch
        %260 = sbr.rel (%p258) target = $region32
      $region31: #{tpu_custom_call.1} parent=5 // pred_region
        // Predicated region
        $region33: #{tpu_custom_call.1} parent=31 // pred_check
          %p261 = pneg %p42
        $region34: #{tpu_custom_call.1} parent=31 // pred_check_branch
          %263 = sbr.rel (%p261) target = $region36
        $region35: #{tpu_custom_call.1} parent=31 // pred_region
          %s264 = smul.u32 2, %s22
          %s265 = ssub.s32 3, %s264
          %p266 = scmp.lt.s32.totalorder %s265, 2
          %s267 = scalar_select %p266, %s265, 2
          %s268 = smul.u32 128, %s267
          %p269 = scmp.lt.s32.totalorder %s264, 2
          %s270 = scalar_select %p269, %s264, 2
          %s271 = smul.addr %s270, 8
          %s272 = scalar_lea.vmem %s0, %s271
          %s273 = smul.u32 2, %s22
          %s274 = ssub.s32 3, %s273
          %p275 = scmp.lt.s32.totalorder %s274, 2
          %s276 = scalar_select %p275, %s274, 2
          %s277 = smul.u32 128, %s276
        $region36: #{tpu_custom_call.1} parent=31 // pred_fallthru
          _
        // Predicated region
        $region37: #{tpu_custom_call.1} parent=31 // pred_check
          %p278 = pneg %p152
        $region38: #{tpu_custom_call.1} parent=31 // pred_check_branch
          %280 = sbr.rel (%p278) target = $region40
        $region39: #{tpu_custom_call.1} parent=31 // pred_region
          %s281 = smul.u32 2, %s22
          %s282 = ssub.s32 3, %s281
          %p283 = scmp.lt.s32.totalorder %s282, 2
          %s284 = scalar_select %p283, %s282, 2
          %s285 = smul.u32 128, %s284
          %p286 = scmp.lt.s32.totalorder %s281, 2
          %s287 = scalar_select %p286, %s281, 2
          %s288 = smul.addr %s287, 8
          %s289 = scalar_lea.vmem %s5, %s288
          %s290 = smul.u32 2, %s22
          %s291 = ssub.s32 3, %s290
          %p292 = scmp.lt.s32.totalorder %s291, 2
          %s293 = scalar_select %p292, %s291, 2
          %s294 = smul.u32 128, %s293
        $region40: #{tpu_custom_call.1} parent=31 // pred_fallthru
          _
      $region32: #{tpu_custom_call.1} parent=5 // pred_fallthru
        _
      %p295 = scmp.le.s32.totalorder 1, %s22
      %p296 = scmp.lt.s32.totalorder %s22, 3
      %p297 = pnand %p295, %p296
      %p298 = pneg %p297
      // Predicated region
      $region41: #{tpu_custom_call.1} parent=5 // pred_check
        _
      $region42: #{tpu_custom_call.1} parent=5 // pred_check_branch
        %300 = sbr.rel (%p297) target = $region44
      $region43: #{tpu_custom_call.1} parent=5 // pred_region
        %s301 = ssub.s32 %s22, 1
        // Predicated region
        $region45: #{tpu_custom_call.1} parent=43 // pred_check
          %p302 = pneg %p69
        $region46: #{tpu_custom_call.1} parent=43 // pred_check_branch
          %304 = sbr.rel (%p302) target = $region48
        $region47: #{tpu_custom_call.1} parent=43 // pred_region
          %305 = dma.done [#allocation3], 256
        $region48: #{tpu_custom_call.1} parent=43 // pred_fallthru
          _
        // Predicated region
        $region49: #{tpu_custom_call.1} parent=43 // pred_check
          %p306 = pneg %p111
        $region50: #{tpu_custom_call.1} parent=43 // pred_check_branch
          %308 = sbr.rel (%p306) target = $region52
        $region51: #{tpu_custom_call.1} parent=43 // pred_region
          %309 = dma.done [#allocation6], 1024
        $region52: #{tpu_custom_call.1} parent=43 // pred_fallthru
          _
        %s310 = smul.u32 2, %s27
        %s311 = ssub.s32 3, %s310
        %p312 = scmp.lt.s32.totalorder %s311, 2
        %s313 = scalar_select %p312, %s311, 2
        %s314 = smul.u32 128, %s313
        %p315 = scmp.lt.s32.totalorder %s310, 2
        %s316 = scalar_select %p315, %s310, 2
        %s317 = smul.addr %s316, 8
        %s318 = scalar_lea.vmem %s0, %s317
        %p319 = pneg %p48
        %p320 = pneg %p45
        %p321 = pneg %p69
        %p322 = pneg %p66
        %p323 = pneg %p90
        %p324 = pneg %p87
        %p325 = pneg %p111
        %p326 = pneg %p108
        %p327 = pneg %p132
        %p328 = pneg %p129
        %s329 = smul.u32 2, %s27
        %s330 = ssub.s32 3, %s329
        %p331 = scmp.lt.s32.totalorder %s330, 2
        %s332 = scalar_select %p331, %s330, 2
        %s333 = smul.u32 128, %s332
        %p334 = scmp.lt.s32.totalorder %s329, 2
        %s335 = scalar_select %p334, %s329, 2
        %s336 = smul.addr %s335, 8
        %s337 = scalar_lea.vmem %s5, %s336
        %p338 = pneg %p158
        %p339 = pneg %p155
        %p340 = pneg %p184
        %p341 = pneg %p181
        %s342 = sand.u32 %s171, 1
        %s343 = scalar_lea.sflag [#allocation4], %s342
        %s344 = sand.u32 %s171, 1
        %s345 = smul.addr %s344, 16
        %s346 = scalar_lea.vmem [#allocation7], %s345
        %p347 = pneg %p210
        %p348 = pneg %p207
        %s349 = sand.u32 %s197, 1
        %s350 = scalar_lea.sflag [#allocation9], %s349
        %s351 = sand.u32 %s197, 1
        %s352 = smul.addr %s351, 8
        %s353 = scalar_lea.vmem [#allocation8], %s352
        %s354 = smul.u32 2, %s27
        %s355 = ssub.s32 3, %s354
        %p356 = scmp.lt.s32.totalorder %s355, 2
        %s357 = scalar_select %p356, %s355, 2
        %s358 = smul.u32 128, %s357
        %p359 = scmp.lt.s32.totalorder %s354, 2
        %s360 = scalar_select %p359, %s354, 2
        %s361 = smul.addr %s360, 8
        %s362 = scalar_lea.vmem %s0, %s361
        %s363 = smul.u32 2, %s27
        %s364 = ssub.s32 3, %s363
        %p365 = scmp.lt.s32.totalorder %s364, 2
        %s366 = scalar_select %p365, %s364, 2
        %s367 = smul.u32 128, %s366
        %s368 = smul.u32 2, %s27
        %s369 = ssub.s32 3, %s368
        %p370 = scmp.lt.s32.totalorder %s369, 2
        %s371 = scalar_select %p370, %s369, 2
        %s372 = smul.u32 128, %s371
        %p373 = scmp.lt.s32.totalorder %s368, 2
        %s374 = scalar_select %p373, %s368, 2
        %s375 = smul.addr %s374, 8
        %s376 = scalar_lea.vmem %s5, %s375
        %s377 = smul.u32 2, %s27
        %s378 = ssub.s32 3, %s377
        %p379 = scmp.lt.s32.totalorder %s378, 2
        %s380 = scalar_select %p379, %s378, 2
        %s381 = smul.u32 128, %s380
        %s382 = smul.u32 2, %s27
        %s383 = ssub.s32 3, %s382
        %p384 = scmp.lt.s32.totalorder %s383, 2
        %s385 = scalar_select %p384, %s383, 2
        %s386 = smul.u32 128, %s385
        %v388 = vld [vmem:[%s362] sm:$0xff]
        %v389 = vld [vmem:[%s362 + $0x8] sm:$0xff]
        %v390 = vpack.c.bf16 %v389, %v388
        %v391 = vld [vmem:[#allocation2] sm:$0xf]
        %v392 = vld [vmem:[#allocation2 + $0x4] sm:$0xf]
        %v393 = vld [vmem:[#allocation2 + $0x8] sm:$0xf]
        %v394 = vld [vmem:[#allocation2 + $0xc] sm:$0xf]
        %v395 = vld [vmem:[%s2] sm:$0x1]
        %v397 = vlaneseq
        %v398 = vshrl.u32 %v397, 7
        %v399 = vsub.s32 0, %v398
        %v400 = vrot.slane %v395, %v399
        %v406 = vunpack.c.l.b16 %v391
        %v407 = vunpack.c.l.b16 %v392
        %v408 = vunpack.c.l.b16 %v393
        %v409 = vunpack.c.l.b16 %v394
        %v410 = vpack.c.b16 %v407, %v406
        %v411 = vpack.c.b16 %v409, %v408
        %vm414 = vcmask 261120
        %v416 = vsel %vm414, %v390, 0
        %418 = vmatprep.subr.bf16.mxu0 0
        %419 = vmatpush1.bf16.msra.mxu0 0
        %420 = vmatprep.subr.bf16.mxu0 0
        %421 = vmatpush1.bf16.msra.mxu0 0
        %422 = vmatprep.subr.bf16.mxu0 0
        %423 = vmatpush1.bf16.msra.mxu0 0
        %424 = vmatprep.subr.bf16.mxu0 0
        %425 = vmatpush1.bf16.msra.mxu0 0
        %426 = vmatprep.subr.bf16.mxu0 0
        %427 = vmatpush1.bf16.msra.mxu0 0
        %428 = vmatprep.subr.bf16.mxu0 0
        %429 = vmatpush1.bf16.msra.mxu0 0
        %430 = vmatprep.subr.bf16.mxu0 0
        %431 = vmatpush1.bf16.msra.mxu0 %v411
        %432 = vmatprep.subr.bf16.mxu0 0
        %433 = vmatpush1.bf16.msra.mxu0 %v410
        %434 = vmatprep.subr.bf16.mxu0 0
        %435 = vmatpush2.bf16.msra.mxu0 0
        %436 = vmatprep.subr.bf16.mxu0 0
        %437 = vmatpush2.bf16.msra.mxu0 0
        %438 = vmatprep.subr.bf16.mxu0 0
        %439 = vmatpush2.bf16.msra.mxu0 0
        %440 = vmatprep.subr.bf16.mxu0 0
        %441 = vmatpush2.bf16.msra.mxu0 0
        %442 = vmatprep.subr.bf16.mxu0 0
        %443 = vmatpush2.bf16.msra.mxu0 0
        %444 = vmatprep.subr.bf16.mxu0 0
        %445 = vmatpush2.bf16.msra.mxu0 0
        %446 = vmatprep.subr.bf16.mxu0 0
        %447 = vmatpush2.bf16.msra.mxu0 0
        %448 = vmatprep.subr.bf16.mxu0 0
        %449 = vmatpush2.bf16.msra.mxu0 0
        %450 = vmatprep.mubr.bf16.mxu0 0
        %451 = vmatmul.mubr.bf16.gmra.mxu0 %v416
        %v452 = vpop.f32.mrf.mxu0
        %v453 = vadd.f32 %v400, %v452
        %v454 = vpop.f32.mrf.mxu0
        %v455 = vpop.f32.mrf.mxu0
        %v456 = vadd.f32 %v400, %v455
        %v457 = vpop.f32.mrf.mxu0
        %458 = vdwg.mxu0
        %v459 = vmax.f32 %v453, 0.0
        %v460 = vmax.f32 %v456, 0.0
        %v461 = vpack.c.bf16 %v460, %v459
        %v462 = vld [vmem:[#allocation5] sm:$0xf]
        %v463 = vld [vmem:[#allocation5 + $0x4] sm:$0xf]
        %v464 = vld [vmem:[#allocation5 + $0x8] sm:$0xf]
        %v465 = vld [vmem:[#allocation5 + $0xc] sm:$0xf]
        %v466 = vld [vmem:[#allocation5 + $0x10] sm:$0xf]
        %v467 = vld [vmem:[#allocation5 + $0x14] sm:$0xf]
        %v468 = vld [vmem:[#allocation5 + $0x18] sm:$0xf]
        %v469 = vld [vmem:[#allocation5 + $0x1c] sm:$0xf]
        %v470 = vld [vmem:[#allocation5 + $0x20] sm:$0xf]
        %v471 = vld [vmem:[#allocation5 + $0x24] sm:$0xf]
        %v472 = vld [vmem:[#allocation5 + $0x28] sm:$0xf]
        %v473 = vld [vmem:[#allocation5 + $0x2c] sm:$0xf]
        %v474 = vld [vmem:[#allocation5 + $0x30] sm:$0xf]
        %v475 = vld [vmem:[#allocation5 + $0x34] sm:$0xf]
        %v476 = vld [vmem:[#allocation5 + $0x38] sm:$0xf]
        %v477 = vld [vmem:[#allocation5 + $0x3c] sm:$0xf]
        %v478 = vld [vmem:[%s4] sm:$0x1]
        %v480 = vlaneseq
        %v481 = vshrl.u32 %v480, 7
        %v482 = vsub.s32 0, %v481
        %v483 = vrot.slane %v478, %v482
        %v501 = vunpack.c.l.b16 %v462
        %v502 = vunpack.c.l.b16 %v463
        %v503 = vunpack.c.l.b16 %v464
        %v504 = vunpack.c.l.b16 %v465
        %v505 = vunpack.c.l.b16 %v466
        %v506 = vunpack.c.l.b16 %v467
        %v507 = vunpack.c.l.b16 %v468
        %v508 = vunpack.c.l.b16 %v469
        %v509 = vunpack.c.l.b16 %v470
        %v510 = vunpack.c.l.b16 %v471
        %v511 = vunpack.c.l.b16 %v472
        %v512 = vunpack.c.l.b16 %v473
        %v513 = vunpack.c.l.b16 %v474
        %v514 = vunpack.c.l.b16 %v475
        %v515 = vunpack.c.l.b16 %v476
        %v516 = vunpack.c.l.b16 %v477
        %v517 = vpack.c.b16 %v502, %v501
        %v518 = vpack.c.b16 %v504, %v503
        %v519 = vpack.c.b16 %v506, %v505
        %v520 = vpack.c.b16 %v508, %v507
        %v521 = vpack.c.b16 %v510, %v509
        %v522 = vpack.c.b16 %v512, %v511
        %v523 = vpack.c.b16 %v514, %v513
        %v524 = vpack.c.b16 %v516, %v515
        %533 = vmatprep.subr.bf16.mxu0 0
        %534 = vmatpush1.bf16.msra.mxu0 %v524
        %535 = vmatprep.subr.bf16.mxu0 0
        %536 = vmatpush1.bf16.msra.mxu0 %v523
        %537 = vmatprep.subr.bf16.mxu0 0
        %538 = vmatpush1.bf16.msra.mxu0 %v522
        %539 = vmatprep.subr.bf16.mxu0 0
        %540 = vmatpush1.bf16.msra.mxu0 %v521
        %541 = vmatprep.subr.bf16.mxu0 0
        %542 = vmatpush1.bf16.msra.mxu0 %v520
        %543 = vmatprep.subr.bf16.mxu0 0
        %544 = vmatpush1.bf16.msra.mxu0 %v519
        %545 = vmatprep.subr.bf16.mxu0 0
        %546 = vmatpush1.bf16.msra.mxu0 %v518
        %547 = vmatprep.subr.bf16.mxu0 0
        %548 = vmatpush1.bf16.msra.mxu0 %v517
        %549 = vmatprep.subr.bf16.mxu0 0
        %550 = vmatpush2.bf16.msra.mxu0 0
        %551 = vmatprep.subr.bf16.mxu0 0
        %552 = vmatpush2.bf16.msra.mxu0 0
        %553 = vmatprep.subr.bf16.mxu0 0
        %554 = vmatpush2.bf16.msra.mxu0 0
        %555 = vmatprep.subr.bf16.mxu0 0
        %556 = vmatpush2.bf16.msra.mxu0 0
        %557 = vmatprep.subr.bf16.mxu0 0
        %558 = vmatpush2.bf16.msra.mxu0 0
        %559 = vmatprep.subr.bf16.mxu0 0
        %560 = vmatpush2.bf16.msra.mxu0 0
        %561 = vmatprep.subr.bf16.mxu0 0
        %562 = vmatpush2.bf16.msra.mxu0 0
        %563 = vmatprep.subr.bf16.mxu0 0
        %564 = vmatpush2.bf16.msra.mxu0 0
        %565 = vmatprep.mubr.bf16.mxu0 0
        %566 = vmatmul.mubr.bf16.gmra.mxu0 %v461
        %v567 = vpop.f32.mrf.mxu0
        %v568 = vadd.f32 %v483, %v567
        %v569 = vpop.f32.mrf.mxu0
        %v570 = vpop.f32.mrf.mxu0
        %v571 = vadd.f32 %v483, %v570
        %v572 = vpop.f32.mrf.mxu0
        %573 = vdwg.mxu0
        %574 = vmax.xlane.f32.xlu0 %v568
        %v575 = vpop.xlane.xlu0 %574
        %576 = vmax.xlane.f32.xlu0 %v571
        %v577 = vpop.xlane.xlu0 %576
        %v578 = vsub.f32 %v568, %v575
        %v579 = vsub.f32 %v571, %v577
        %v580 = vmul.f32 %v578, 1.442695
        %v581 = vpow.pop %v580
        %v582 = vmul.f32 %v579, 1.442695
        %v583 = vpow.pop %v582
        %584 = vadd.xlane.f32.xlu0 %v581
        %v585 = vpop.xlane.xlu0 %584
        %586 = vadd.xlane.f32.xlu0 %v583
        %v587 = vpop.xlane.xlu0 %586
        %v588 = vrcp.pop %v585
        %v589 = vmul.f32 %v581, %v588
        %v590 = vrcp.pop %v587
        %v591 = vmul.f32 %v583, %v590
        %592 = vst [vmem:[%s346] sm:$0xff] %v589
        %593 = vst [vmem:[%s346 + $0x8] sm:$0xff] %v591
        %v594 = vlaneseq
        %v595 = vand.u32 %v594, 127
        %v596 = vld [vmem:[%s376] sm:$0xff]
        %v597 = vld [vmem:[%s376 + $0x8] sm:$0xff]
        %598 = vset.pattern.permute.xlu0 0
        %599 = vperm.xlu0 %598, %v596
        %v600 = vpop.permute.xlu0 %599
        %601 = vset.pattern.permute.xlu0 0
        %602 = vperm.xlu0 %601, %v597
        %v603 = vpop.permute.xlu0 %602
        %vm604 = vcmp.eq.s32.totalorder %v595, %v600
        %vm605 = vcmp.eq.s32.totalorder %v595, %v603
        %v606 = vsel %vm604, %v568, 0.0
        %v607 = vsel %vm605, %v571, 0.0
        %608 = vadd.xlane.f32.xlu0 %v606
        %v609 = vpop.xlane.xlu0 %608
        %610 = vadd.xlane.f32.xlu0 %v607
        %v611 = vpop.xlane.xlu0 %610
        %v612 = vlog2.pop %v585
        %v613 = vmul.f32 %v612, 0.6931472
        %v614 = vlog2.pop %v587
        %v615 = vmul.f32 %v614, 0.6931472
        %v616 = vadd.f32 %v575, %v613
        %v617 = vadd.f32 %v577, %v615
        %v618 = vsub.f32 %v616, %v609
        %v619 = vsub.f32 %v617, %v611
        %s620 = smul.u32 %s27, 16
        %v621 = vlaneseq
        %v622 = vshrl.u32 %v621, 7
        %v623 = vadd.s32 %v622, 8
        %v624 = vstv %s620
        %v625 = vadd.s32 %v624, %v622
        %v626 = vadd.s32 %v624, %v623
        %vm627 = vcmp.lt.s32.totalorder %v625, 24
        %vm628 = vcmp.lt.s32.totalorder %v626, 24
        %v629 = vsel %vm627, %v618, 0.0
        %v630 = vsel %vm628, %v619, 0.0
        %vm631 = vcmask 7168
        %v632 = vsel %vm631, %v629, 0.0
        %v633 = vsel %vm631, %v630, 0.0
        %v634 = vadd.f32 %v632, %v633
        %635 = vadd.xlane.f32.xlu0 %v634
        %v636 = vpop.xlane.xlu0 %635
        %v637 = vrot.slane %v636, 4
        %v638 = vadd.f32 %v636, %v637
        %v639 = vrot.slane %v638, 2
        %v640 = vadd.f32 %v638, %v639
        %v641 = vrot.slane %v640, 1
        %v642 = vadd.f32 %v640, %v641
        %s643 = vtos %v642
        %v644 = vstv %s643
        %645 = vst [vmem:[%s353] sm:$0xff] %v644
        %s646 = sand.u32 %s171, 1
        %s647 = scalar_lea.sflag [#allocation4], %s646
        %s648 = sand.u32 %s171, 1
        %s649 = smul.addr %s648, 16
        %s650 = scalar_lea.vmem [#allocation7], %s649
        %s651 = sand.u32 %s197, 1
        %s652 = scalar_lea.sflag [#allocation9], %s651
        %s653 = sand.u32 %s197, 1
        %s654 = smul.addr %s653, 8
        %s655 = scalar_lea.vmem [#allocation8], %s654
        // Predicated region
        $region53: #{tpu_custom_call.1} parent=43 // pred_check
          %p656 = pneg %p181
        $region54: #{tpu_custom_call.1} parent=43 // pred_check_branch
          %658 = sbr.rel (%p656) target = $region56
        $region55: #{tpu_custom_call.1} parent=43 // pred_region
          %s659 = smul.u32 2, %s27
          %s660 = ssub.s32 3, %s659
          %p661 = scmp.lt.s32.totalorder %s660, 2
          %s662 = scalar_select %p661, %s660, 2
          %s663 = smul.u32 128, %s662
          %s665 = ssub.s32 256, %s663
          %666 = vsyncadd %s647, %s665
          %p667 = scmp.ne.s32.totalorder 0, %s663
          %s668 = smul.addr %s659, 128
          %s669 = scalar_lea.hbm %s6, %s668
          %s670 = smul.u32 8, %s662
          %s671 = sshll.u32 %s650, 4
          %s672 = int_to_ptr.vmem [resolvable:$true] %s671
          %s673 = sshll.u32 %s670, 4
          %677 = dma.vmem_to_hbm [thread:$0]  (%p667), %s672, %s673, %s669, %s647, 128, 128, 8
        $region56: #{tpu_custom_call.1} parent=43 // pred_fallthru
          _
        // Predicated region
        $region57: #{tpu_custom_call.1} parent=43 // pred_check
          %p678 = pneg %p207
        $region58: #{tpu_custom_call.1} parent=43 // pred_check_branch
          %680 = sbr.rel (%p678) target = $region60
        $region59: #{tpu_custom_call.1} parent=43 // pred_region
          %s682 = ssub.s32 128, 128
          %683 = vsyncadd %s652, %s682
          %s684 = smul.addr %s27, 128
          %s685 = scalar_lea.hbm %s7, %s684
          %s687 = sshll.u32 %s655, 4
          %s688 = int_to_ptr.vmem [resolvable:$true] %s687
          %690 = dma.vmem_to_hbm [thread:$0]  %s688, 128, %s685, %s652
        $region60: #{tpu_custom_call.1} parent=43 // pred_fallthru
          _
      $region44: #{tpu_custom_call.1} parent=5 // pred_fallthru
        _
      %p691 = scmp.le.s32.totalorder 2, %s22
      // Predicated region
      $region61: #{tpu_custom_call.1} parent=5 // pred_check
        %p692 = pneg %p691
      $region62: #{tpu_custom_call.1} parent=5 // pred_check_branch
        %694 = sbr.rel (%p692) target = $region64
      $region63: #{tpu_custom_call.1} parent=5 // pred_region
        %s695 = ssub.s32 %s22, 2
        // Predicated region
        $region65: #{tpu_custom_call.1} parent=63 // pred_check
          %p696 = pneg %p187
        $region66: #{tpu_custom_call.1} parent=63 // pred_check_branch
          %698 = sbr.rel (%p696) target = $region68
        $region67: #{tpu_custom_call.1} parent=63 // pred_region
          %s699 = sand.u32 %s172, 1
          %s700 = scalar_lea.sflag [#allocation4], %s699
          %s701 = sand.u32 %s172, 1
          %s702 = smul.addr %s701, 16
          %s703 = scalar_lea.vmem [#allocation7], %s702
          %704 = dma.done %s700, 256
        $region68: #{tpu_custom_call.1} parent=63 // pred_fallthru
          _
        // Predicated region
        $region69: #{tpu_custom_call.1} parent=63 // pred_check
          %p705 = pneg %p213
        $region70: #{tpu_custom_call.1} parent=63 // pred_check_branch
          %707 = sbr.rel (%p705) target = $region72
        $region71: #{tpu_custom_call.1} parent=63 // pred_region
          %s708 = sand.u32 %s198, 1
          %s709 = scalar_lea.sflag [#allocation9], %s708
          %s710 = sand.u32 %s198, 1
          %s711 = smul.addr %s710, 8
          %s712 = scalar_lea.vmem [#allocation8], %s711
          %713 = dma.done %s709, 128
        $region72: #{tpu_custom_call.1} parent=63 // pred_fallthru
          _
      $region64: #{tpu_custom_call.1} parent=5 // pred_fallthru
        _
    $region6: #{tpu_custom_call.1} parent=1 // loop_footer
      %s26 = sadd.s32 1, %s22
    $region7: #{tpu_custom_call.1} parent=1 // loop_footer_branch
      %21 = sbr.rel target = $region3
    $region8: #{tpu_custom_call.1} parent=1 // loop_exit
      _
    %714 = vsyncpa [#allocation3], 1
    %s715 = scalar_lea.sflag [#allocation3], 1
    %716 = vsyncpa %s715, 1
    %717 = vsyncpa [#allocation6], 1
    %718 = vsyncpa [#allocation4], 1
    %s719 = scalar_lea.sflag [#allocation4], 1
    %720 = vsyncpa %s719, 1
    %721 = vsyncpa [#allocation9], 1
    %s722 = scalar_lea.sflag [#allocation9], 1
    %723 = vsyncpa %s722, 1

</llo_original>
